<compile_context>
chip_gen: v7x
topology: tpu7x:2x2x1
jax: 0.10.0
libtpu: 0.0.40
codegen_flags: <defaults>
</compile_context>

<pallas_src>
import functools

import jax
import jax.numpy as jnp
from jax.experimental import pallas as pl
from jax.experimental.pallas import tpu as pltpu


# ------------------------------- kernel --------------------------------------


def _infonce_kernel(x_ref, y_ref, loss_ref, yn_ref, *,
                    inv_temp, eps, n_rows, block_rows):
    i = pl.program_id(0)

    @pl.when(i == 0)
    def _init():
        loss_ref[...] = jnp.zeros_like(loss_ref)
        # Normalize the (resident) target block once; reuse it on every step.
        y = y_ref[...].astype(jnp.float32)
        ynorm = jnp.sqrt(jnp.sum(y * y, axis=-1, keepdims=True))
        yn_ref[...] = y / jnp.maximum(ynorm, eps)

    x = x_ref[...].astype(jnp.float32)                       # (tm, D)
    xnorm = jnp.sqrt(jnp.sum(x * x, axis=-1, keepdims=True))  # (tm, 1)
    xinv = 1.0 / jnp.maximum(xnorm, eps)

    # (tm, B) raw dot products against unit-norm targets on the MXU, then a
    # cheap per-row rescale gives the scaled cosine logits.
    raw = jax.lax.dot_general(
        x, yn_ref[...], (((1,), (1,)), ((), ())),
        preferred_element_type=jnp.float32,
        precision=jax.lax.Precision.HIGHEST,
    )
    sim = raw * (xinv * inv_temp)                             # (tm, B)

    tm, n_cols = sim.shape

    # Numerically stable log-sum-exp over the target (column) axis.
    m = jnp.max(sim, axis=-1, keepdims=True)
    lse = m + jnp.log(jnp.sum(jnp.exp(sim - m), axis=-1, keepdims=True))

    # Diagonal logit for each globally-indexed row (label[i] == i).
    row_global = (jax.lax.broadcasted_iota(jnp.int32, (tm, n_cols), 0)
                  + i * block_rows)
    col = jax.lax.broadcasted_iota(jnp.int32, (tm, n_cols), 1)
    diag = jnp.sum(jnp.where(col == row_global, sim, 0.0),
                   axis=-1, keepdims=True)

    # Mask padded remainder rows of the last tile (where() selects, so any
    # NaN/Inf produced from out-of-bounds garbage rows is discarded).
    valid = row_global[:, :1] < n_rows
    contrib = jnp.where(valid, lse - diag, 0.0)               # (tm, 1)

    loss_ref[...] += jnp.sum(contrib, axis=0, keepdims=True)  # (1, 1)

    @pl.when(i == pl.num_programs(0) - 1)
    def _finalize():
        loss_ref[...] = loss_ref[...] * (1.0 / n_rows)        # mean reduction


# ------------------------------ wrapper ---------------------------------------


def _pick_block_rows(requested, batch):
    if requested >= batch:
        return batch                          # single full-extent tile
    return max(8, (requested // 8) * 8)       # sublane-aligned tiles


def infonce_loss(online, target, temp=0.05, *, block_rows=256, eps=1e-8):
    """online, target: (B, D) embeddings. Returns the scalar InfoNCE loss."""
    B, D = online.shape
    assert target.shape == (B, D)

    tm = _pick_block_rows(block_rows, B)
    grid = (pl.cdiv(B, tm),)

    kernel = functools.partial(
        _infonce_kernel,
        inv_temp=float(1.0 / temp),
        eps=float(eps),
        n_rows=B,
        block_rows=tm,
    )

    loss = pl.pallas_call(
        kernel,
        out_shape=jax.ShapeDtypeStruct((1, 1), jnp.float32),
        grid_spec=pltpu.PrefetchScalarGridSpec(
            num_scalar_prefetch=0,
            grid=grid,
            in_specs=[
                pl.BlockSpec((tm, D), lambda i: (i, 0)),   # online row tile
                pl.BlockSpec((B, D), lambda i: (0, 0)),    # raw targets, resident
            ],
            out_specs=pl.BlockSpec((1, 1), lambda i: (0, 0)),
            scratch_shapes=[pltpu.VMEM((B, D), jnp.float32)],  # normalized targets
        ),
        compiler_params=pltpu.CompilerParams(
            dimension_semantics=("arbitrary",),  # scalar accumulator across tiles
        ),
    )(online, target)
    return loss[0, 0]


# ------------------------------ reference -------------------------------------


def infonce_ref(online, target, temp=0.05, eps=1e-8):
    xn = online / jnp.maximum(
        jnp.linalg.norm(online, axis=-1, keepdims=True), eps)
    yn = target / jnp.maximum(
        jnp.linalg.norm(target, axis=-1, keepdims=True), eps)
    sim = jnp.matmul(xn, yn.T, precision=jax.lax.Precision.HIGHEST) / temp
    labels = jnp.arange(online.shape[0])
    lse = jax.scipy.special.logsumexp(sim, axis=-1)
    return jnp.mean(lse - sim[labels, labels])


if __name__ == "__main__":
    key = jax.random.PRNGKey(0)
    k_on, k_tg = jax.random.split(key, 2)

    batch, hidden = 8, 32    # small CLS-representation shapes (B, H)
    temp = 0.05

    online = jax.random.normal(k_on, (batch, hidden), dtype=jnp.float32)
    target = jax.random.normal(k_tg, (batch, hidden), dtype=jnp.float32)

    loss = infonce_loss(online, target, temp=temp)
    loss = jax.block_until_ready(loss)
    ref = infonce_ref(online, target, temp=temp)
    assert loss.shape == ()
    assert jnp.allclose(loss, ref, atol=1e-4, rtol=1e-4), (loss, ref)

    # Remainder-row path (batch not a multiple of the row tile).
    k1, k2 = jax.random.split(jax.random.PRNGKey(1))
    online2 = jax.random.normal(k1, (12, hidden), dtype=jnp.float32)
    target2 = jax.random.normal(k2, (12, hidden), dtype=jnp.float32)
    loss2 = jax.block_until_ready(
        infonce_loss(online2, target2, temp=temp, block_rows=8))
    ref2 = infonce_ref(online2, target2, temp=temp)
    assert jnp.allclose(loss2, ref2, atol=1e-4, rtol=1e-4), (loss2, ref2)

    print("KERNEL_OK")
</pallas_src>

<mosaic_0001>
module attributes {stable_mosaic.version = 11 : i64} {
  func.func @_infonce_kernel(%arg0: i32, %arg1: memref<8x32xf32, #tpu.memory_space<vmem>>, %arg2: memref<8x32xf32, #tpu.memory_space<vmem>>, %arg3: memref<1x1xf32, #tpu.memory_space<vmem>>, %arg4: memref<8x32xf32, #tpu.memory_space<vmem>>) attributes {dimension_semantics = [#tpu.dimension_semantics<arbitrary>], iteration_bounds = array<i64: 1>, scalar_prefetch = 0 : i64, scratch_operands = 1 : i64, tpu.core_type = #tpu.core_type<tc>, window_params = [{transform_indices = @transform_0, window_bounds = array<i64: 8, 32>}, {pipeline_mode = #tpu.pipeline_mode<synchronous>, transform_indices = @transform_1, window_bounds = array<i64: 8, 32>}, {pipeline_mode = #tpu.pipeline_mode<synchronous>, transform_indices = @transform_2, window_bounds = array<i64: 1, 1>}]} {
    %c0_i32 = arith.constant 0 : i32
    %0 = arith.cmpi eq, %arg0, %c0_i32 : i32
    %1 = arith.extui %0 : i1 to i32
    %c0_i32_0 = arith.constant 0 : i32
    %2 = arith.cmpi ne, %1, %c0_i32_0 : i32
    scf.if %2 {
      %cst_21 = arith.constant 0.000000e+00 : f32
      %51 = vector.broadcast %cst_21 : f32 to vector<1x1xf32>
      %c0_22 = arith.constant 0 : index
      %c0_23 = arith.constant 0 : index
      %52 = vector.load %arg3[%c0_22, %c0_23] : memref<1x1xf32, #tpu.memory_space<vmem>>, vector<1x1xf32>
      tpu.vector_store %arg3[%c0_22, %c0_23], %51 {strides = array<i32>} : memref<1x1xf32, #tpu.memory_space<vmem>>, vector<1x1xf32>,
      %c0_24 = arith.constant 0 : index
      %c0_25 = arith.constant 0 : index
      %53 = vector.load %arg2[%c0_24, %c0_25] : memref<8x32xf32, #tpu.memory_space<vmem>>, vector<8x32xf32>
      %54 = arith.mulf %53, %53 : vector<8x32xf32>
      %cst_26 = arith.constant dense<0.000000e+00> : vector<8xf32>
      %55 = vector.multi_reduction <add>, %54, %cst_26 [1] : vector<8x32xf32> to vector<8xf32>
      %56 = vector.shape_cast %55 : vector<8xf32> to vector<8x1xf32>
      %57 = math.sqrt %56 : vector<8x1xf32>
      %cst_27 = arith.constant 9.99999993E-9 : f32
      %58 = vector.broadcast %cst_27 : f32 to vector<8x1xf32>
      %59 = arith.maximumf %57, %58 : vector<8x1xf32>
      %60 = vector.broadcast %59 : vector<8x1xf32> to vector<8x32xf32>
      %61 = arith.divf %53, %60 : vector<8x32xf32>
      %c0_28 = arith.constant 0 : index
      %c0_29 = arith.constant 0 : index
      %62 = vector.load %arg4[%c0_28, %c0_29] : memref<8x32xf32, #tpu.memory_space<vmem>>, vector<8x32xf32>
      tpu.vector_store %arg4[%c0_28, %c0_29], %61 {strides = array<i32>} : memref<8x32xf32, #tpu.memory_space<vmem>>, vector<8x32xf32>,
    } else {
    }
    %c0 = arith.constant 0 : index
    %c0_1 = arith.constant 0 : index
    %3 = vector.load %arg1[%c0, %c0_1] : memref<8x32xf32, #tpu.memory_space<vmem>>, vector<8x32xf32>
    %4 = arith.mulf %3, %3 : vector<8x32xf32>
    %cst = arith.constant dense<0.000000e+00> : vector<8xf32>
    %5 = vector.multi_reduction <add>, %4, %cst [1] : vector<8x32xf32> to vector<8xf32>
    %6 = vector.shape_cast %5 : vector<8xf32> to vector<8x1xf32>
    %7 = math.sqrt %6 : vector<8x1xf32>
    %cst_2 = arith.constant 9.99999993E-9 : f32
    %8 = vector.broadcast %cst_2 : f32 to vector<8x1xf32>
    %9 = arith.maximumf %7, %8 : vector<8x1xf32>
    %cst_3 = arith.constant 1.000000e+00 : f32
    %10 = vector.broadcast %cst_3 : f32 to vector<8x1xf32>
    %11 = arith.divf %10, %9 : vector<8x1xf32>
    %c0_4 = arith.constant 0 : index
    %c0_5 = arith.constant 0 : index
    %12 = vector.load %arg4[%c0_4, %c0_5] : memref<8x32xf32, #tpu.memory_space<vmem>>, vector<8x32xf32>
    %cst_6 = arith.constant dense<0.000000e+00> : vector<8x8xf32>
    %13 = tpu.matmul %3, %12, %cst_6 {dimension_numbers = #tpu.dot_dimension_numbers<[1], [1], [0], [0], [0, 0, 1, 0], [], []>, precision = #tpu.contract_precision<fp32>} : vector<8x32xf32>, vector<8x32xf32>, vector<8x8xf32> -> vector<8x8xf32>
    %cst_7 = arith.constant 2.000000e+01 : f32
    %14 = vector.broadcast %cst_7 : f32 to vector<8x1xf32>
    %15 = arith.mulf %11, %14 : vector<8x1xf32>
    %16 = vector.broadcast %15 : vector<8x1xf32> to vector<8x8xf32>
    %17 = arith.mulf %13, %16 : vector<8x8xf32>
    %cst_8 = arith.constant dense<0xFF800000> : vector<8xf32>
    %18 = vector.multi_reduction <maximumf>, %17, %cst_8 [1] : vector<8x8xf32> to vector<8xf32>
    %19 = vector.shape_cast %18 : vector<8xf32> to vector<8x1xf32>
    %20 = vector.broadcast %19 : vector<8x1xf32> to vector<8x8xf32>
    %21 = arith.subf %17, %20 : vector<8x8xf32>
    %22 = math.exp %21 : vector<8x8xf32>
    %cst_9 = arith.constant dense<0.000000e+00> : vector<8xf32>
    %23 = vector.multi_reduction <add>, %22, %cst_9 [1] : vector<8x8xf32> to vector<8xf32>
    %24 = vector.shape_cast %23 : vector<8xf32> to vector<8x1xf32>
    %25 = math.log %24 : vector<8x1xf32>
    %26 = arith.addf %19, %25 : vector<8x1xf32>
    %27 = tpu.iota {dimensions = array<i32: 0>} : vector<8x8xi32>
    %c8_i32 = arith.constant 8 : i32
    %28 = arith.muli %arg0, %c8_i32 : i32
    %29 = vector.broadcast %28 : i32 to vector<8x8xi32>
    %30 = arith.addi %27, %29 : vector<8x8xi32>
    %31 = tpu.iota {dimensions = array<i32: 1>} : vector<8x8xi32>
    %32 = arith.cmpi eq, %31, %30 : vector<8x8xi32>
    %cst_10 = arith.constant 0.000000e+00 : f32
    %33 = vector.broadcast %cst_10 : f32 to vector<8x8xf32>
    %34 = arith.select %32, %17, %33 : vector<8x8xi1>, vector<8x8xf32>
    %cst_11 = arith.constant dense<0.000000e+00> : vector<8xf32>
    %35 = vector.multi_reduction <add>, %34, %cst_11 [1] : vector<8x8xf32> to vector<8xf32>
    %36 = vector.shape_cast %35 : vector<8xf32> to vector<8x1xf32>
    %37 = vector.extract_strided_slice %30 {offsets = [0, 0], sizes = [8, 1], strides = [1, 1]} : vector<8x8xi32> to vector<8x1xi32>
    %c8_i32_12 = arith.constant 8 : i32
    %38 = vector.broadcast %c8_i32_12 : i32 to vector<8x1xi32>
    %39 = arith.cmpi slt, %37, %38 : vector<8x1xi32>
    %40 = arith.subf %26, %36 : vector<8x1xf32>
    %cst_13 = arith.constant 0.000000e+00 : f32
    %41 = vector.broadcast %cst_13 : f32 to vector<8x1xf32>
    %42 = arith.select %39, %40, %41 : vector<8x1xi1>, vector<8x1xf32>
    %c0_14 = arith.constant 0 : index
    %c0_15 = arith.constant 0 : index
    %43 = vector.load %arg3[%c0_14, %c0_15] : memref<1x1xf32, #tpu.memory_space<vmem>>, vector<1x1xf32>
    %cst_16 = arith.constant dense<0.000000e+00> : vector<1xf32>
    %44 = vector.multi_reduction <add>, %42, %cst_16 [0] : vector<8x1xf32> to vector<1xf32>
    %45 = vector.shape_cast %44 : vector<1xf32> to vector<1x1xf32>
    %46 = arith.addf %43, %45 : vector<1x1xf32>
    %c0_17 = arith.constant 0 : index
    %c0_18 = arith.constant 0 : index
    %47 = vector.load %arg3[%c0_17, %c0_18] : memref<1x1xf32, #tpu.memory_space<vmem>>, vector<1x1xf32>
    tpu.vector_store %arg3[%c0_17, %c0_18], %46 {strides = array<i32>} : memref<1x1xf32, #tpu.memory_space<vmem>>, vector<1x1xf32>,
    %c0_i32_19 = arith.constant 0 : i32
    %48 = arith.cmpi eq, %arg0, %c0_i32_19 : i32
    %49 = arith.extui %48 : i1 to i32
    %c0_i32_20 = arith.constant 0 : i32
    %50 = arith.cmpi ne, %49, %c0_i32_20 : i32
    scf.if %50 {
      %c0_21 = arith.constant 0 : index
      %c0_22 = arith.constant 0 : index
      %51 = vector.load %arg3[%c0_21, %c0_22] : memref<1x1xf32, #tpu.memory_space<vmem>>, vector<1x1xf32>
      %cst_23 = arith.constant 1.250000e-01 : f32
      %52 = vector.broadcast %cst_23 : f32 to vector<1x1xf32>
      %53 = arith.mulf %51, %52 : vector<1x1xf32>
      %c0_24 = arith.constant 0 : index
      %c0_25 = arith.constant 0 : index
      %54 = vector.load %arg3[%c0_24, %c0_25] : memref<1x1xf32, #tpu.memory_space<vmem>>, vector<1x1xf32>
      tpu.vector_store %arg3[%c0_24, %c0_25], %53 {strides = array<i32>} : memref<1x1xf32, #tpu.memory_space<vmem>>, vector<1x1xf32>,
    } else {
    }
    return
  }
  func.func @transform_0(%arg0: i32) -> (i32, i32) {
    %c0_i32 = arith.constant 0 : i32
    %c0_i32_0 = arith.constant 0 : i32
    return %arg0, %c0_i32 : i32, i32
  }
  func.func @transform_1(%arg0: i32) -> (i32, i32) {
    %c0_i32 = arith.constant 0 : i32
    %c0_i32_0 = arith.constant 0 : i32
    %c0_i32_1 = arith.constant 0 : i32
    return %c0_i32, %c0_i32_0 : i32, i32
  }
  func.func @transform_2(%arg0: i32) -> (i32, i32) {
    %c0_i32 = arith.constant 0 : i32
    %c0_i32_0 = arith.constant 0 : i32
    %c0_i32_1 = arith.constant 0 : i32
    return %c0_i32, %c0_i32_0 : i32, i32
  }
}

</mosaic_0001>

<llo_original>
// kernel: tpu_custom_call.1
$region0: #{tpu_custom_call.1}
  #allocation0 [shape = 'u32[]', space=smem, size = 0x4, offset = 0x4, fixed_abs, tag = 'smem constant byte address 0x4 - core index']
  #allocation1 [shape = 'u32[144,128]{1,0:T(1,128)}', space=vmem, size = 0x12000, scoped, tag = 'internal scratch']
  #allocation2 [shape = 'f32[8,32]{1,0:T(8,128)}', space=vmem, size = 0x1000, scoped, tag = 'scratch operand']
  %s0 = inlined_call_operand.hbm [shape: f32[8,32], index: 0, kind: input, shape index: {}]
  %s1 = inlined_call_operand.hbm [shape: f32[8,32], index: 1, kind: input, shape index: {}]
  %s2 = inlined_call_operand.hbm [shape: f32[1,1], index: 2, kind: output, shape index: {}]
  %s3 = sld [smem:[#allocation0]]
  $region34: #{tpu_custom_call.1} parent=0
    _
  %s5 = ssub.s32 1, %s3
  %s6 = scalar_select 0, %s5, %s3
  $region1: #{tpu_custom_call.1} parent=0
    #allocation3 [shape = 'u8[4096]{0}', space=vmem, size = 0x1000, scoped, tag = 'input window, operand 0, single buffered']
    #allocation4 [shape = 's32[1]{0}', space=sflag, size = 0x4, scoped, tag = 'scoped memory for tpu_custom_call.1']
    #allocation5 [shape = 's32[1]{0}', space=sflag, size = 0x4, scoped, tag = 'scoped memory for tpu_custom_call.1']
    #allocation6 [shape = 'u8[4096]{0}', space=vmem, size = 0x1000, scoped, tag = 'input window, operand 1, single buffered']
    #allocation7 [shape = 's32[1]{0}', space=sflag, size = 0x4, scoped, tag = 'scoped memory for tpu_custom_call.1']
    #allocation8 [shape = 'u8[512]{0}', space=vmem, size = 0x400, scoped, tag = 'output window, operand 0, single buffered']
    %7 = vsyncpa [#allocation4], 0
    %8 = vsyncpa [#allocation7], 0
    %9 = vsyncpa [#allocation5], 0
    // Predicated region
    $region2: #{tpu_custom_call.1} parent=1 // pred_check
      _
    $region3: #{tpu_custom_call.1} parent=1 // pred_check_branch
      %11 = sbr.rel (0) target = $region5
    $region4: #{tpu_custom_call.1} parent=1 // pred_region
      %s13 = ssub.s32 128, 128
      %14 = vsyncadd [#allocation4], %s13
      %s16 = sshll.u32 [#allocation3], 4
      %s17 = int_to_ptr.vmem [resolvable:$true] %s16
      %19 = dma.hbm_to_vmem [thread:$0]  %s0, 128, %s17, [#allocation4]
    $region5: #{tpu_custom_call.1} parent=1 // pred_fallthru
      _
    // Predicated region
    $region6: #{tpu_custom_call.1} parent=1 // pred_check
      _
    $region7: #{tpu_custom_call.1} parent=1 // pred_check_branch
      %21 = sbr.rel (0) target = $region9
    $region8: #{tpu_custom_call.1} parent=1 // pred_region
      %s23 = ssub.s32 128, 128
      %24 = vsyncadd [#allocation7], %s23
      %s26 = sshll.u32 [#allocation6], 4
      %s27 = int_to_ptr.vmem [resolvable:$true] %s26
      %29 = dma.hbm_to_vmem [thread:$0]  %s1, 128, %s27, [#allocation7]
    $region9: #{tpu_custom_call.1} parent=1 // pred_fallthru
      _
    // Predicated region
    $region10: #{tpu_custom_call.1} parent=1 // pred_check
      _
    $region11: #{tpu_custom_call.1} parent=1 // pred_check_branch
      %31 = sbr.rel (0) target = $region13
    $region12: #{tpu_custom_call.1} parent=1 // pred_region
      %32 = dma.done [#allocation4], 128
    $region13: #{tpu_custom_call.1} parent=1 // pred_fallthru
      _
    // Predicated region
    $region14: #{tpu_custom_call.1} parent=1 // pred_check
      _
    $region15: #{tpu_custom_call.1} parent=1 // pred_check_branch
      %34 = sbr.rel (0) target = $region17
    $region16: #{tpu_custom_call.1} parent=1 // pred_region
      %35 = dma.done [#allocation7], 128
    $region17: #{tpu_custom_call.1} parent=1 // pred_fallthru
      _
    %p36 = scmp.eq.s32.totalorder 0, 0
    // Predicated region
    $region18: #{tpu_custom_call.1} parent=1 // pred_check
      %p37 = pneg %p36
    $region19: #{tpu_custom_call.1} parent=1 // pred_check_branch
      %39 = sbr.rel (%p37) target = $region21
    $region20: #{tpu_custom_call.1} parent=1 // pred_region
      %vm40 = vcmask 0
      %41 = vst.msk [vmem:[#allocation8] sm:$0x1] %vm40, 0.0
      %v42 = vld [vmem:[#allocation6] sm:$0xff]
      %v43 = vmul.f32 %v42, %v42
      %vm44 = vcmask 261120
      %v45 = vsel %vm44, %v43, 0.0
      %46 = vadd.xlane.f32.xlu0 %v45
      %v47 = vpop.xlane.xlu0 %46
      %v48 = vrsqrt.pop %v47
      %v49 = vmul.f32 %v47, %v48
      %vm50 = vcmp.eq.f32.partialorder %v47, inf
      %v51 = vsel %vm50, %v47, %v49
      %vm52 = vcmp.eq.f32.partialorder %v47, 0.0
      %v53 = vand.u32 %v47, 2147483648
      %v54 = vsel %vm52, %v53, %v51
      %v55 = vmax.f32 %v54, 1e-08
      %v56 = vrcp.pop %v55
      %v57 = vmul.f32 %v42, %v56
      %58 = vst.msk [vmem:[#allocation2] sm:$0xff] %vm44, %v57
    $region21: #{tpu_custom_call.1} parent=1 // pred_fallthru
      _
    %v59 = vld [vmem:[#allocation3] sm:$0xff]
    %v60 = vmul.f32 %v59, %v59
    %vm61 = vcmask 261120
    %v62 = vsel %vm61, %v60, 0.0
    %63 = vadd.xlane.f32.xlu0 %v62
    %v64 = vpop.xlane.xlu0 %63
    %v65 = vrsqrt.pop %v64
    %v66 = vmul.f32 %v64, %v65
    %vm67 = vcmp.eq.f32.partialorder %v64, inf
    %v68 = vsel %vm67, %v64, %v66
    %vm69 = vcmp.eq.f32.partialorder %v64, 0.0
    %v70 = vand.u32 %v64, 2147483648
    %v71 = vsel %vm69, %v70, %v68
    %v72 = vmax.f32 %v71, 1e-08
    %v73 = vrcp.pop %v72
    %v74 = vmul.f32 1.0, %v73
    %v75 = vld [vmem:[#allocation2] sm:$0xff]
    %v77 = vsel %vm61, %v59, 0
    %v80 = vsel %vm61, %v75, 0
    %82 = vmatprep.subr.mxu0 0.0
    %v83 = vand.u32 %v80, 4294901760
    %84 = vmatpush1.xpose.msra.mxu0 %v83
    %85 = vmatprep.subr.mxu0 0.0
    %86 = vmatpush1.xpose.msra.mxu0 0.0
    %87 = vmatprep.subr.mxu0 0.0
    %88 = vmatpush1.xpose.msra.mxu0 0.0
    %89 = vmatprep.subr.mxu0 0.0
    %90 = vmatpush1.xpose.msra.mxu0 0.0
    %91 = vmatprep.subr.mxu0 0.0
    %92 = vmatpush1.xpose.msra.mxu0 0.0
    %93 = vmatprep.subr.mxu0 0.0
    %94 = vmatpush1.xpose.msra.mxu0 0.0
    %95 = vmatprep.subr.mxu0 0.0
    %96 = vmatpush1.xpose.msra.mxu0 0.0
    %97 = vmatprep.subr.mxu0 0.0
    %98 = vmatpush1.xpose.msra.mxu0 0.0
    %99 = vmatprep.subr.mxu0 0.0
    %100 = vmatpush1.xpose.msra.mxu0 0.0
    %101 = vmatprep.subr.mxu0 0.0
    %102 = vmatpush1.xpose.msra.mxu0 0.0
    %103 = vmatprep.subr.mxu0 0.0
    %104 = vmatpush1.xpose.msra.mxu0 0.0
    %105 = vmatprep.subr.mxu0 0.0
    %106 = vmatpush1.xpose.msra.mxu0 0.0
    %107 = vmatprep.subr.mxu0 0.0
    %108 = vmatpush1.xpose.msra.mxu0 0.0
    %109 = vmatprep.subr.mxu0 0.0
    %110 = vmatpush1.xpose.msra.mxu0 0.0
    %111 = vmatprep.subr.mxu0 0.0
    %112 = vmatpush1.xpose.msra.mxu0 0.0
    %113 = vmatprep.subr.mxu0 0.0
    %114 = vmatpush1.xpose.msra.mxu0 0.0
    %115 = vmatprep.subr.mxu0 0.0
    %116 = vmatpush1.xpose.msra.mxu0 0.0
    %117 = vmatprep.subr.mxu0 0.0
    %118 = vmatpush1.xpose.msra.mxu0 0.0
    %119 = vmatprep.subr.mxu0 0.0
    %120 = vmatpush1.xpose.msra.mxu0 0.0
    %121 = vmatprep.subr.mxu0 0.0
    %122 = vmatpush1.xpose.msra.mxu0 0.0
    %123 = vmatprep.subr.mxu0 0.0
    %124 = vmatpush1.xpose.msra.mxu0 0.0
    %125 = vmatprep.subr.mxu0 0.0
    %126 = vmatpush1.xpose.msra.mxu0 0.0
    %127 = vmatprep.subr.mxu0 0.0
    %128 = vmatpush1.xpose.msra.mxu0 0.0
    %129 = vmatprep.subr.mxu0 0.0
    %130 = vmatpush1.xpose.msra.mxu0 0.0
    %131 = vmatprep.subr.mxu0 0.0
    %132 = vmatpush1.xpose.msra.mxu0 0.0
    %133 = vmatprep.subr.mxu0 0.0
    %134 = vmatpush1.xpose.msra.mxu0 0.0
    %135 = vmatprep.subr.mxu0 0.0
    %136 = vmatpush1.xpose.msra.mxu0 0.0
    %137 = vmatprep.subr.mxu0 0.0
    %138 = vmatpush1.xpose.msra.mxu0 0.0
    %139 = vmatprep.subr.mxu0 0.0
    %140 = vmatpush1.xpose.msra.mxu0 0.0
    %141 = vmatprep.subr.mxu0 0.0
    %142 = vmatpush1.xpose.msra.mxu0 0.0
    %143 = vmatprep.subr.mxu0 0.0
    %144 = vmatpush1.xpose.msra.mxu0 0.0
    %145 = vmatprep.subr.mxu0 0.0
    %146 = vmatpush1.xpose.msra.mxu0 0.0
    %147 = vmatprep.mubr.f32.mxu0 0.0
    %v148 = vand.u32 %v77, 4294901760
    %v149 = vsub.f32 %v77, %v148
    %v150 = vand.u32 %v149, 4294901760
    %v151 = vsub.f32 %v149, %v150
    %v152 = vand.u32 %v151, 4294901760
    %153 = vmatmul.mubr.f32.gmra.mrb[0].mxu0 %v152
    %v154 = vpop.f32.mrb[0].mxu0
    %v155 = vadd.f32 0.0, %v154
    %v156 = vpop.f32.mrb[0].mxu0
    %157 = vdwg.mxu0
    %158 = vmatprep.subr.mxu0 0.0
    %v159 = vand.u32 %v80, 4294901760
    %v160 = vsub.f32 %v80, %v159
    %v161 = vand.u32 %v160, 4294901760
    %v162 = vsub.f32 %v160, %v161
    %v163 = vand.u32 %v162, 4294901760
    %164 = vmatpush1.xpose.msra.mxu0 %v163
    %165 = vmatprep.subr.mxu0 0.0
    %166 = vmatpush1.xpose.msra.mxu0 0.0
    %167 = vmatprep.subr.mxu0 0.0
    %168 = vmatpush1.xpose.msra.mxu0 0.0
    %169 = vmatprep.subr.mxu0 0.0
    %170 = vmatpush1.xpose.msra.mxu0 0.0
    %171 = vmatprep.subr.mxu0 0.0
    %172 = vmatpush1.xpose.msra.mxu0 0.0
    %173 = vmatprep.subr.mxu0 0.0
    %174 = vmatpush1.xpose.msra.mxu0 0.0
    %175 = vmatprep.subr.mxu0 0.0
    %176 = vmatpush1.xpose.msra.mxu0 0.0
    %177 = vmatprep.subr.mxu0 0.0
    %178 = vmatpush1.xpose.msra.mxu0 0.0
    %179 = vmatprep.subr.mxu0 0.0
    %180 = vmatpush1.xpose.msra.mxu0 0.0
    %181 = vmatprep.subr.mxu0 0.0
    %182 = vmatpush1.xpose.msra.mxu0 0.0
    %183 = vmatprep.subr.mxu0 0.0
    %184 = vmatpush1.xpose.msra.mxu0 0.0
    %185 = vmatprep.subr.mxu0 0.0
    %186 = vmatpush1.xpose.msra.mxu0 0.0
    %187 = vmatprep.subr.mxu0 0.0
    %188 = vmatpush1.xpose.msra.mxu0 0.0
    %189 = vmatprep.subr.mxu0 0.0
    %190 = vmatpush1.xpose.msra.mxu0 0.0
    %191 = vmatprep.subr.mxu0 0.0
    %192 = vmatpush1.xpose.msra.mxu0 0.0
    %193 = vmatprep.subr.mxu0 0.0
    %194 = vmatpush1.xpose.msra.mxu0 0.0
    %195 = vmatprep.subr.mxu0 0.0
    %196 = vmatpush1.xpose.msra.mxu0 0.0
    %197 = vmatprep.subr.mxu0 0.0
    %198 = vmatpush1.xpose.msra.mxu0 0.0
    %199 = vmatprep.subr.mxu0 0.0
    %200 = vmatpush1.xpose.msra.mxu0 0.0
    %201 = vmatprep.subr.mxu0 0.0
    %202 = vmatpush1.xpose.msra.mxu0 0.0
    %203 = vmatprep.subr.mxu0 0.0
    %204 = vmatpush1.xpose.msra.mxu0 0.0
    %205 = vmatprep.subr.mxu0 0.0
    %206 = vmatpush1.xpose.msra.mxu0 0.0
    %207 = vmatprep.subr.mxu0 0.0
    %208 = vmatpush1.xpose.msra.mxu0 0.0
    %209 = vmatprep.subr.mxu0 0.0
    %210 = vmatpush1.xpose.msra.mxu0 0.0
    %211 = vmatprep.subr.mxu0 0.0
    %212 = vmatpush1.xpose.msra.mxu0 0.0
    %213 = vmatprep.subr.mxu0 0.0
    %214 = vmatpush1.xpose.msra.mxu0 0.0
    %215 = vmatprep.subr.mxu0 0.0
    %216 = vmatpush1.xpose.msra.mxu0 0.0
    %217 = vmatprep.subr.mxu0 0.0
    %218 = vmatpush1.xpose.msra.mxu0 0.0
    %219 = vmatprep.subr.mxu0 0.0
    %220 = vmatpush1.xpose.msra.mxu0 0.0
    %221 = vmatprep.subr.mxu0 0.0
    %222 = vmatpush1.xpose.msra.mxu0 0.0
    %223 = vmatprep.subr.mxu0 0.0
    %224 = vmatpush1.xpose.msra.mxu0 0.0
    %225 = vmatprep.subr.mxu0 0.0
    %226 = vmatpush1.xpose.msra.mxu0 0.0
    %227 = vmatprep.mubr.f32.mxu0 0.0
    %v228 = vand.u32 %v77, 4294901760
    %229 = vmatmul.mubr.f32.gmra.mrb[0].mxu0 %v228
    %v230 = vpop.f32.mrb[0].mxu0
    %v231 = vadd.f32 %v155, %v230
    %v232 = vpop.f32.mrb[0].mxu0
    %233 = vdwg.mxu0
    %234 = vmatprep.subr.mxu0 0.0
    %v235 = vand.u32 %v80, 4294901760
    %v236 = vsub.f32 %v80, %v235
    %237 = vmatpush1.xpose.msra.mxu0 %v236
    %238 = vmatprep.subr.mxu0 0.0
    %239 = vmatpush1.xpose.msra.mxu0 0.0
    %240 = vmatprep.subr.mxu0 0.0
    %241 = vmatpush1.xpose.msra.mxu0 0.0
    %242 = vmatprep.subr.mxu0 0.0
    %243 = vmatpush1.xpose.msra.mxu0 0.0
    %244 = vmatprep.subr.mxu0 0.0
    %245 = vmatpush1.xpose.msra.mxu0 0.0
    %246 = vmatprep.subr.mxu0 0.0
    %247 = vmatpush1.xpose.msra.mxu0 0.0
    %248 = vmatprep.subr.mxu0 0.0
    %249 = vmatpush1.xpose.msra.mxu0 0.0
    %250 = vmatprep.subr.mxu0 0.0
    %251 = vmatpush1.xpose.msra.mxu0 0.0
    %252 = vmatprep.subr.mxu0 0.0
    %253 = vmatpush1.xpose.msra.mxu0 0.0
    %254 = vmatprep.subr.mxu0 0.0
    %255 = vmatpush1.xpose.msra.mxu0 0.0
    %256 = vmatprep.subr.mxu0 0.0
    %257 = vmatpush1.xpose.msra.mxu0 0.0
    %258 = vmatprep.subr.mxu0 0.0
    %259 = vmatpush1.xpose.msra.mxu0 0.0
    %260 = vmatprep.subr.mxu0 0.0
    %261 = vmatpush1.xpose.msra.mxu0 0.0
    %262 = vmatprep.subr.mxu0 0.0
    %263 = vmatpush1.xpose.msra.mxu0 0.0
    %264 = vmatprep.subr.mxu0 0.0
    %265 = vmatpush1.xpose.msra.mxu0 0.0
    %266 = vmatprep.subr.mxu0 0.0
    %267 = vmatpush1.xpose.msra.mxu0 0.0
    %268 = vmatprep.subr.mxu0 0.0
    %269 = vmatpush1.xpose.msra.mxu0 0.0
    %270 = vmatprep.subr.mxu0 0.0
    %271 = vmatpush1.xpose.msra.mxu0 0.0
    %272 = vmatprep.subr.mxu0 0.0
    %273 = vmatpush1.xpose.msra.mxu0 0.0
    %274 = vmatprep.subr.mxu0 0.0
    %275 = vmatpush1.xpose.msra.mxu0 0.0
    %276 = vmatprep.subr.mxu0 0.0
    %277 = vmatpush1.xpose.msra.mxu0 0.0
    %278 = vmatprep.subr.mxu0 0.0
    %279 = vmatpush1.xpose.msra.mxu0 0.0
    %280 = vmatprep.subr.mxu0 0.0
    %281 = vmatpush1.xpose.msra.mxu0 0.0
    %282 = vmatprep.subr.mxu0 0.0
    %283 = vmatpush1.xpose.msra.mxu0 0.0
    %284 = vmatprep.subr.mxu0 0.0
    %285 = vmatpush1.xpose.msra.mxu0 0.0
    %286 = vmatprep.subr.mxu0 0.0
    %287 = vmatpush1.xpose.msra.mxu0 0.0
    %288 = vmatprep.subr.mxu0 0.0
    %289 = vmatpush1.xpose.msra.mxu0 0.0
    %290 = vmatprep.subr.mxu0 0.0
    %291 = vmatpush1.xpose.msra.mxu0 0.0
    %292 = vmatprep.subr.mxu0 0.0
    %293 = vmatpush1.xpose.msra.mxu0 0.0
    %294 = vmatprep.subr.mxu0 0.0
    %295 = vmatpush1.xpose.msra.mxu0 0.0
    %296 = vmatprep.subr.mxu0 0.0
    %297 = vmatpush1.xpose.msra.mxu0 0.0
    %298 = vmatprep.subr.mxu0 0.0
    %299 = vmatpush1.xpose.msra.mxu0 0.0
    %300 = vmatprep.mubr.f32.mxu0 0.0
    %v301 = vand.u32 %v77, 4294901760
    %v302 = vsub.f32 %v77, %v301
    %303 = vmatmul.mubr.f32.gmra.mrb[0].mxu0 %v302
    %v304 = vpop.f32.mrb[0].mxu0
    %v305 = vadd.f32 %v231, %v304
    %v306 = vpop.f32.mrb[0].mxu0
    %307 = vdwg.mxu0
    %308 = vmatprep.subr.mxu0 0.0
    %v309 = vand.u32 %v80, 4294901760
    %310 = vmatpush1.xpose.msra.mxu0 %v309
    %311 = vmatprep.subr.mxu0 0.0
    %312 = vmatpush1.xpose.msra.mxu0 0.0
    %313 = vmatprep.subr.mxu0 0.0
    %314 = vmatpush1.xpose.msra.mxu0 0.0
    %315 = vmatprep.subr.mxu0 0.0
    %316 = vmatpush1.xpose.msra.mxu0 0.0
    %317 = vmatprep.subr.mxu0 0.0
    %318 = vmatpush1.xpose.msra.mxu0 0.0
    %319 = vmatprep.subr.mxu0 0.0
    %320 = vmatpush1.xpose.msra.mxu0 0.0
    %321 = vmatprep.subr.mxu0 0.0
    %322 = vmatpush1.xpose.msra.mxu0 0.0
    %323 = vmatprep.subr.mxu0 0.0
    %324 = vmatpush1.xpose.msra.mxu0 0.0
    %325 = vmatprep.subr.mxu0 0.0
    %326 = vmatpush1.xpose.msra.mxu0 0.0
    %327 = vmatprep.subr.mxu0 0.0
    %328 = vmatpush1.xpose.msra.mxu0 0.0
    %329 = vmatprep.subr.mxu0 0.0
    %330 = vmatpush1.xpose.msra.mxu0 0.0
    %331 = vmatprep.subr.mxu0 0.0
    %332 = vmatpush1.xpose.msra.mxu0 0.0
    %333 = vmatprep.subr.mxu0 0.0
    %334 = vmatpush1.xpose.msra.mxu0 0.0
    %335 = vmatprep.subr.mxu0 0.0
    %336 = vmatpush1.xpose.msra.mxu0 0.0
    %337 = vmatprep.subr.mxu0 0.0
    %338 = vmatpush1.xpose.msra.mxu0 0.0
    %339 = vmatprep.subr.mxu0 0.0
    %340 = vmatpush1.xpose.msra.mxu0 0.0
    %341 = vmatprep.subr.mxu0 0.0
    %342 = vmatpush1.xpose.msra.mxu0 0.0
    %343 = vmatprep.subr.mxu0 0.0
    %344 = vmatpush1.xpose.msra.mxu0 0.0
    %345 = vmatprep.subr.mxu0 0.0
    %346 = vmatpush1.xpose.msra.mxu0 0.0
    %347 = vmatprep.subr.mxu0 0.0
    %348 = vmatpush1.xpose.msra.mxu0 0.0
    %349 = vmatprep.subr.mxu0 0.0
    %350 = vmatpush1.xpose.msra.mxu0 0.0
    %351 = vmatprep.subr.mxu0 0.0
    %352 = vmatpush1.xpose.msra.mxu0 0.0
    %353 = vmatprep.subr.mxu0 0.0
    %354 = vmatpush1.xpose.msra.mxu0 0.0
    %355 = vmatprep.subr.mxu0 0.0
    %356 = vmatpush1.xpose.msra.mxu0 0.0
    %357 = vmatprep.subr.mxu0 0.0
    %358 = vmatpush1.xpose.msra.mxu0 0.0
    %359 = vmatprep.subr.mxu0 0.0
    %360 = vmatpush1.xpose.msra.mxu0 0.0
    %361 = vmatprep.subr.mxu0 0.0
    %362 = vmatpush1.xpose.msra.mxu0 0.0
    %363 = vmatprep.subr.mxu0 0.0
    %364 = vmatpush1.xpose.msra.mxu0 0.0
    %365 = vmatprep.subr.mxu0 0.0
    %366 = vmatpush1.xpose.msra.mxu0 0.0
    %367 = vmatprep.subr.mxu0 0.0
    %368 = vmatpush1.xpose.msra.mxu0 0.0
    %369 = vmatprep.subr.mxu0 0.0
    %370 = vmatpush1.xpose.msra.mxu0 0.0
    %371 = vmatprep.subr.mxu0 0.0
    %372 = vmatpush1.xpose.msra.mxu0 0.0
    %373 = vmatprep.mubr.f32.mxu0 0.0
    %v374 = vand.u32 %v77, 4294901760
    %v375 = vsub.f32 %v77, %v374
    %v376 = vand.u32 %v375, 4294901760
    %377 = vmatmul.mubr.f32.gmra.mrb[0].mxu0 %v376
    %v378 = vpop.f32.mrb[0].mxu0
    %v379 = vadd.f32 %v305, %v378
    %v380 = vpop.f32.mrb[0].mxu0
    %381 = vdwg.mxu0
    %382 = vmatprep.subr.mxu0 0.0
    %v383 = vand.u32 %v80, 4294901760
    %v384 = vsub.f32 %v80, %v383
    %v385 = vand.u32 %v384, 4294901760
    %386 = vmatpush1.xpose.msra.mxu0 %v385
    %387 = vmatprep.subr.mxu0 0.0
    %388 = vmatpush1.xpose.msra.mxu0 0.0
    %389 = vmatprep.subr.mxu0 0.0
    %390 = vmatpush1.xpose.msra.mxu0 0.0
    %391 = vmatprep.subr.mxu0 0.0
    %392 = vmatpush1.xpose.msra.mxu0 0.0
    %393 = vmatprep.subr.mxu0 0.0
    %394 = vmatpush1.xpose.msra.mxu0 0.0
    %395 = vmatprep.subr.mxu0 0.0
    %396 = vmatpush1.xpose.msra.mxu0 0.0
    %397 = vmatprep.subr.mxu0 0.0
    %398 = vmatpush1.xpose.msra.mxu0 0.0
    %399 = vmatprep.subr.mxu0 0.0
    %400 = vmatpush1.xpose.msra.mxu0 0.0
    %401 = vmatprep.subr.mxu0 0.0
    %402 = vmatpush1.xpose.msra.mxu0 0.0
    %403 = vmatprep.subr.mxu0 0.0
    %404 = vmatpush1.xpose.msra.mxu0 0.0
    %405 = vmatprep.subr.mxu0 0.0
    %406 = vmatpush1.xpose.msra.mxu0 0.0
    %407 = vmatprep.subr.mxu0 0.0
    %408 = vmatpush1.xpose.msra.mxu0 0.0
    %409 = vmatprep.subr.mxu0 0.0
    %410 = vmatpush1.xpose.msra.mxu0 0.0
    %411 = vmatprep.subr.mxu0 0.0
    %412 = vmatpush1.xpose.msra.mxu0 0.0
    %413 = vmatprep.subr.mxu0 0.0
    %414 = vmatpush1.xpose.msra.mxu0 0.0
    %415 = vmatprep.subr.mxu0 0.0
    %416 = vmatpush1.xpose.msra.mxu0 0.0
    %417 = vmatprep.subr.mxu0 0.0
    %418 = vmatpush1.xpose.msra.mxu0 0.0
    %419 = vmatprep.subr.mxu0 0.0
    %420 = vmatpush1.xpose.msra.mxu0 0.0
    %421 = vmatprep.subr.mxu0 0.0
    %422 = vmatpush1.xpose.msra.mxu0 0.0
    %423 = vmatprep.subr.mxu0 0.0
    %424 = vmatpush1.xpose.msra.mxu0 0.0
    %425 = vmatprep.subr.mxu0 0.0
    %426 = vmatpush1.xpose.msra.mxu0 0.0
    %427 = vmatprep.subr.mxu0 0.0
    %428 = vmatpush1.xpose.msra.mxu0 0.0
    %429 = vmatprep.subr.mxu0 0.0
    %430 = vmatpush1.xpose.msra.mxu0 0.0
    %431 = vmatprep.subr.mxu0 0.0
    %432 = vmatpush1.xpose.msra.mxu0 0.0
    %433 = vmatprep.subr.mxu0 0.0
    %434 = vmatpush1.xpose.msra.mxu0 0.0
    %435 = vmatprep.subr.mxu0 0.0
    %436 = vmatpush1.xpose.msra.mxu0 0.0
    %437 = vmatprep.subr.mxu0 0.0
    %438 = vmatpush1.xpose.msra.mxu0 0.0
    %439 = vmatprep.subr.mxu0 0.0
    %440 = vmatpush1.xpose.msra.mxu0 0.0
    %441 = vmatprep.subr.mxu0 0.0
    %442 = vmatpush1.xpose.msra.mxu0 0.0
    %443 = vmatprep.subr.mxu0 0.0
    %444 = vmatpush1.xpose.msra.mxu0 0.0
    %445 = vmatprep.subr.mxu0 0.0
    %446 = vmatpush1.xpose.msra.mxu0 0.0
    %447 = vmatprep.subr.mxu0 0.0
    %448 = vmatpush1.xpose.msra.mxu0 0.0
    %449 = vmatprep.mubr.f32.mxu0 0.0
    %v450 = vand.u32 %v77, 4294901760
    %451 = vmatmul.mubr.f32.gmra.mrb[0].mxu0 %v450
    %v452 = vpop.f32.mrb[0].mxu0
    %v453 = vadd.f32 %v379, %v452
    %v454 = vpop.f32.mrb[0].mxu0
    %455 = vdwg.mxu0
    %456 = vmatprep.subr.mxu0 0.0
    %v457 = vand.u32 %v80, 4294901760
    %458 = vmatpush1.xpose.msra.mxu0 %v457
    %459 = vmatprep.subr.mxu0 0.0
    %460 = vmatpush1.xpose.msra.mxu0 0.0
    %461 = vmatprep.subr.mxu0 0.0
    %462 = vmatpush1.xpose.msra.mxu0 0.0
    %463 = vmatprep.subr.mxu0 0.0
    %464 = vmatpush1.xpose.msra.mxu0 0.0
    %465 = vmatprep.subr.mxu0 0.0
    %466 = vmatpush1.xpose.msra.mxu0 0.0
    %467 = vmatprep.subr.mxu0 0.0
    %468 = vmatpush1.xpose.msra.mxu0 0.0
    %469 = vmatprep.subr.mxu0 0.0
    %470 = vmatpush1.xpose.msra.mxu0 0.0
    %471 = vmatprep.subr.mxu0 0.0
    %472 = vmatpush1.xpose.msra.mxu0 0.0
    %473 = vmatprep.subr.mxu0 0.0
    %474 = vmatpush1.xpose.msra.mxu0 0.0
    %475 = vmatprep.subr.mxu0 0.0
    %476 = vmatpush1.xpose.msra.mxu0 0.0
    %477 = vmatprep.subr.mxu0 0.0
    %478 = vmatpush1.xpose.msra.mxu0 0.0
    %479 = vmatprep.subr.mxu0 0.0
    %480 = vmatpush1.xpose.msra.mxu0 0.0
    %481 = vmatprep.subr.mxu0 0.0
    %482 = vmatpush1.xpose.msra.mxu0 0.0
    %483 = vmatprep.subr.mxu0 0.0
    %484 = vmatpush1.xpose.msra.mxu0 0.0
    %485 = vmatprep.subr.mxu0 0.0
    %486 = vmatpush1.xpose.msra.mxu0 0.0
    %487 = vmatprep.subr.mxu0 0.0
    %488 = vmatpush1.xpose.msra.mxu0 0.0
    %489 = vmatprep.subr.mxu0 0.0
    %490 = vmatpush1.xpose.msra.mxu0 0.0
    %491 = vmatprep.subr.mxu0 0.0
    %492 = vmatpush1.xpose.msra.mxu0 0.0
    %493 = vmatprep.subr.mxu0 0.0
    %494 = vmatpush1.xpose.msra.mxu0 0.0
    %495 = vmatprep.subr.mxu0 0.0
    %496 = vmatpush1.xpose.msra.mxu0 0.0
    %497 = vmatprep.subr.mxu0 0.0
    %498 = vmatpush1.xpose.msra.mxu0 0.0
    %499 = vmatprep.subr.mxu0 0.0
    %500 = vmatpush1.xpose.msra.mxu0 0.0
    %501 = vmatprep.subr.mxu0 0.0
    %502 = vmatpush1.xpose.msra.mxu0 0.0
    %503 = vmatprep.subr.mxu0 0.0
    %504 = vmatpush1.xpose.msra.mxu0 0.0
    %505 = vmatprep.subr.mxu0 0.0
    %506 = vmatpush1.xpose.msra.mxu0 0.0
    %507 = vmatprep.subr.mxu0 0.0
    %508 = vmatpush1.xpose.msra.mxu0 0.0
    %509 = vmatprep.subr.mxu0 0.0
    %510 = vmatpush1.xpose.msra.mxu0 0.0
    %511 = vmatprep.subr.mxu0 0.0
    %512 = vmatpush1.xpose.msra.mxu0 0.0
    %513 = vmatprep.subr.mxu0 0.0
    %514 = vmatpush1.xpose.msra.mxu0 0.0
    %515 = vmatprep.subr.mxu0 0.0
    %516 = vmatpush1.xpose.msra.mxu0 0.0
    %517 = vmatprep.subr.mxu0 0.0
    %518 = vmatpush1.xpose.msra.mxu0 0.0
    %519 = vmatprep.subr.mxu0 0.0
    %520 = vmatpush1.xpose.msra.mxu0 0.0
    %521 = vmatprep.mubr.f32.mxu0 0.0
    %v522 = vand.u32 %v77, 4294901760
    %523 = vmatmul.mubr.f32.gmra.mrb[0].mxu0 %v522
    %v524 = vpop.f32.mrb[0].mxu0
    %v525 = vadd.f32 %v453, %v524
    %v526 = vpop.f32.mrb[0].mxu0
    %527 = vdwg.mxu0
    %v528 = vmul.f32 %v74, 20.0
    %v529 = vmul.f32 %v525, %v528
    %vm530 = vcmask 64512
    %v531 = vsel %vm530, %v529, -inf
    %532 = vmax.xlane.f32.xlu0 %v531
    %v533 = vpop.xlane.xlu0 %532
    %v534 = vsub.f32 %v529, %v533
    %v535 = vmul.f32 %v534, 1.442695
    %v536 = vpow.pop %v535
    %v537 = vsel %vm530, %v536, 0.0
    %538 = vadd.xlane.f32.xlu0 %v537
    %v539 = vpop.xlane.xlu0 %538
    %v540 = vlog2.pop %v539
    %v541 = vmul.f32 %v540, 0.6931472
    %v542 = vadd.f32 %v533, %v541
    %v543 = vlaneseq
    %v544 = vshrl.u32 %v543, 7
    %s545 = smul.u32 0, 8
    %v546 = vstv %s545
    %v547 = vadd.s32 %v544, %v546
    %v548 = vlaneseq
    %v549 = vand.u32 %v548, 127
    %vm550 = vcmp.eq.s32.totalorder %v549, %v547
    %v551 = vsel %vm550, %v529, 0.0
    %v552 = vsel %vm530, %v551, 0.0
    %553 = vadd.xlane.f32.xlu0 %v552
    %v554 = vpop.xlane.xlu0 %553
    %vm555 = vcmp.lt.s32.totalorder %v547, 8
    %v556 = vsub.f32 %v542, %v554
    %v557 = vsel %vm555, %v556, 0.0
    %v558 = vld [vmem:[#allocation8] sm:$0x1]
    %v559 = vrot.slane %v557, 4
    %v560 = vadd.f32 %v557, %v559
    %v561 = vrot.slane %v560, 2
    %v562 = vadd.f32 %v560, %v561
    %v563 = vrot.slane %v562, 1
    %v564 = vadd.f32 %v562, %v563
    %v565 = vadd.f32 %v558, %v564
    %vm566 = vcmask 0
    %567 = vst.msk [vmem:[#allocation8] sm:$0x1] %vm566, %v565
    // Predicated region
    $region22: #{tpu_custom_call.1} parent=1 // pred_check
      %p568 = pneg %p36
    $region23: #{tpu_custom_call.1} parent=1 // pred_check_branch
      %570 = sbr.rel (%p568) target = $region25
    $region24: #{tpu_custom_call.1} parent=1 // pred_region
      %v571 = vld [vmem:[#allocation8] sm:$0x1]
      %v572 = vmul.f32 %v571, 0.125
      %573 = vst.msk [vmem:[#allocation8] sm:$0x1] %vm566, %v572
    $region25: #{tpu_custom_call.1} parent=1 // pred_fallthru
      _
    // Predicated region
    $region26: #{tpu_custom_call.1} parent=1 // pred_check
      _
    $region27: #{tpu_custom_call.1} parent=1 // pred_check_branch
      %575 = sbr.rel (0) target = $region29
    $region28: #{tpu_custom_call.1} parent=1 // pred_region
      %s577 = ssub.s32 16, 16
      %578 = vsyncadd [#allocation5], %s577
      %s580 = sshll.u32 [#allocation8], 4
      %s581 = int_to_ptr.vmem [resolvable:$true] %s580
      %583 = dma.vmem_to_hbm [thread:$0]  %s581, 16, %s2, [#allocation5]
    $region29: #{tpu_custom_call.1} parent=1 // pred_fallthru
      _
    // Predicated region
    $region30: #{tpu_custom_call.1} parent=1 // pred_check
      _
    $region31: #{tpu_custom_call.1} parent=1 // pred_check_branch
      %585 = sbr.rel (0) target = $region33
    $region32: #{tpu_custom_call.1} parent=1 // pred_region
      %586 = dma.done [#allocation5], 16
    $region33: #{tpu_custom_call.1} parent=1 // pred_fallthru
      _
    %587 = vsyncpa [#allocation4], 1
    %588 = vsyncpa [#allocation7], 1
    %589 = vsyncpa [#allocation5], 1

</llo_original>
